<compile_context>
chip_gen: v6e
topology: v6e:2x2x1
jax: 0.10.0
libtpu: 0.0.40
codegen_flags: <defaults>
</compile_context>

<pallas_src>
import functools

import jax
import jax.numpy as jnp
from jax import lax
from jax.experimental import pallas as pl
from jax.experimental.pallas import tpu as pltpu


# ---------------------------------------------------------------------------
# Hardware-aware sizing helpers
# ---------------------------------------------------------------------------

def _vmem_capacity_bytes():
    try:
        info = pltpu.get_tpu_info()
        cap = getattr(info, "vmem_capacity_bytes", None)
        if cap:
            return int(cap)
    except Exception:
        pass
    return 128 * 1024 * 1024


def _pick_batch_block(B, N, D, K, itemsize, vmem_budget_bytes):
    """Largest batch block whose per-step buffers fit the budget, without
    collapsing the grid: keep >= min(B, 4) steps so double buffering has depth
    and both v7x TensorCores get work under dimension_semantics=('parallel',)."""
    per_batch = (N * D + K * D) * itemsize + K * 4
    b_blk = max(1, min(B, 16, vmem_budget_bytes // max(per_batch, 1)))
    b_blk = min(b_blk, max(1, B // min(B, 4)))
    while B % b_blk:
        b_blk -= 1
    return int(b_blk)


# ---------------------------------------------------------------------------
# Dense path: one-hot select matmul on the MXU (high keep fraction)
# ---------------------------------------------------------------------------

def _dense_gather_kernel(idx_ref, x_ref, o_ref, *, precision):
    # idx_ref : VMEM (B_blk, 1, K) int32 — gather indices, lane-dense
    # x_ref   : VMEM (B_blk, N, D)       — full token sequence for these batches
    # o_ref   : VMEM (B_blk, K, D)       — gathered rows (cls + kept patches)
    b_blk, n, _ = x_ref.shape
    k = o_ref.shape[1]

    # Loop-invariant token-id grid (broadcast_in_dim is not CSE'd -> hoist).
    token_ids = lax.broadcasted_iota(jnp.int32, (n, k), 0)

    def body(b, carry):
        # Transposed one-hot (N, K) built directly from the lane-dense index
        # row (no (1,K)->(K,1) relayout needed).
        onehot_t = (token_ids == idx_ref[b]).astype(x_ref.dtype)
        # Row selection as one MXU matmul contracting the token axis of both
        # operands -> a single dense (K, D) block store per batch.
        gathered = lax.dot_general(
            onehot_t, x_ref[b],
            dimension_numbers=(((0,), (0,)), ((), ())),
            preferred_element_type=jnp.float32,
            precision=precision)
        o_ref[b] = gathered.astype(o_ref.dtype)
        return carry

    # Cap the unroll: each live iteration holds an (N, K) one-hot + MXU result.
    lax.fori_loop(0, b_blk, body, 0, unroll=min(2, b_blk))


def _gather_dense(x, idx, vmem_capacity, vmem_limit):
    B, N, D = x.shape
    K = idx.shape[1]
    # Per-buffer-set budget: conservative on 64 MiB-VMEM chips (v7x), roomier
    # on 128 MiB chips (v5e/v6e) -> bigger blocks, fewer ~0.35us grid steps.
    budget = (8 * 1024 * 1024 if vmem_capacity <= 64 * 1024 * 1024
              else 20 * 1024 * 1024)
    B_blk = _pick_batch_block(B, N, D, K, x.dtype.itemsize, budget)

    # f32 "gather" must not round through a single-pass bf16 MXU multiply.
    precision = lax.Precision.HIGHEST if x.dtype == jnp.float32 else None

    idx3 = idx[:, None, :]                      # (B, 1, K): lane-dense in VMEM
    kernel = functools.partial(_dense_gather_kernel, precision=precision)

    return pl.pallas_call(
        kernel,
        out_shape=jax.ShapeDtypeStruct((B, K, D), x.dtype),
        grid_spec=pltpu.PrefetchScalarGridSpec(
            num_scalar_prefetch=0,
            grid=(B // B_blk,),
            in_specs=[
                pl.BlockSpec((B_blk, 1, K), lambda i: (i, 0, 0)),
                pl.BlockSpec((B_blk, N, D), lambda i: (i, 0, 0)),
            ],
            out_specs=pl.BlockSpec((B_blk, K, D), lambda i: (i, 0, 0)),
        ),
        compiler_params=pltpu.CompilerParams(
            dimension_semantics=("parallel",),
            vmem_limit_bytes=vmem_limit,
        ),
    )(idx3, x)


# ---------------------------------------------------------------------------
# Sparse path: per-row DMA gather (low keep fraction / non-float dtypes)
# ---------------------------------------------------------------------------

def _dma_gather_kernel(idx_ref, x_hbm, o_ref, sem):
    # idx_ref : SMEM (B*K,) int32  — scalar-prefetched gather indices
    # x_hbm   : HBM  (B, N, D)     — full input; only kept rows are read
    # o_ref   : VMEM (1, K, D)     — output block for batch `b`
    b = pl.program_id(0)
    k_count = o_ref.shape[1]

    # Issue every row DMA first (they all overlap in flight), then wait for
    # them all; the pipelined output writeback happens after the body returns.
    def start_one(k, carry):
        row = idx_ref[b * k_count + k]
        pltpu.make_async_copy(
            x_hbm.at[b, pl.ds(row, 1), :],
            o_ref.at[0, pl.ds(k, 1), :],
            sem,
        ).start()
        return carry

    lax.fori_loop(0, k_count, start_one, 0)

    def wait_one(k, carry):
        pltpu.make_async_copy(
            x_hbm.at[b, pl.ds(0, 1), :],
            o_ref.at[0, pl.ds(k, 1), :],
            sem,
        ).wait()
        return carry

    lax.fori_loop(0, k_count, wait_one, 0)


def _gather_dma(x, idx, vmem_limit):
    B, N, D = x.shape
    K = idx.shape[1]
    idx_flat = idx.reshape(B * K)      # flat 1-D SMEM layout (avoids 2-D padding)

    return pl.pallas_call(
        _dma_gather_kernel,
        out_shape=jax.ShapeDtypeStruct((B, K, D), x.dtype),
        grid_spec=pltpu.PrefetchScalarGridSpec(
            num_scalar_prefetch=1,                           # idx_flat -> SMEM
            grid=(B,),
            in_specs=[pl.BlockSpec(memory_space=pl.ANY)],    # x stays in HBM
            out_specs=pl.BlockSpec((1, K, D), lambda b, idx_ref: (b, 0, 0)),
            scratch_shapes=[pltpu.SemaphoreType.DMA(())],
        ),
        compiler_params=pltpu.CompilerParams(
            dimension_semantics=("parallel",),
            vmem_limit_bytes=vmem_limit,
        ),
    )(idx_flat, x)


# ---------------------------------------------------------------------------
# Public gather + PatchDropout wrapper
# ---------------------------------------------------------------------------

def gather_tokens_pallas(x, indices, path=None):
    """out[b, k] = x[b, indices[b, k]].   x: (B, N, D); indices: (B, K) int32."""
    B, N, D = x.shape
    K = indices.shape[1]
    idx = indices.astype(jnp.int32)

    if path is None:
        # HBM-read bound: below ~half the tokens kept, fetching only the kept
        # rows reads less than streaming the full sequence through VMEM.
        path = "dma" if (2 * K <= N) else "dense"
    if not jnp.issubdtype(x.dtype, jnp.floating):
        path = "dma"   # one-hot MXU gather is float-only (no int path on v7x)

    cap = _vmem_capacity_bytes()
    vmem_limit = 64 * 1024 * 1024 if cap > 64 * 1024 * 1024 else None

    if path == "dma":
        return _gather_dma(x, idx, vmem_limit)
    return _gather_dense(x, idx, cap, vmem_limit)


def patch_dropout(x, key, prob, exclude_first_token=True):
    """JAX/Pallas equivalent of PatchDropout.forward (training mode)."""
    assert 0 <= prob < 1.0
    B, N, _ = x.shape
    num_tokens = N - 1 if exclude_first_token else N
    keep_prob = 1.0 - prob
    num_keep = max(1, int(num_tokens * keep_prob))

    # torch.randn(batch, num_tokens).topk(k).indices -> random token subset.
    rand = jax.random.normal(key, (B, num_tokens))
    _, patch_indices_keep = lax.top_k(rand, num_keep)          # (B, K) int32

    if exclude_first_token:
        # Fold the cls token into the gather: index 0 (cls) + shifted patches.
        full_idx = jnp.concatenate(
            [jnp.zeros((B, 1), jnp.int32), patch_indices_keep + 1], axis=1)
    else:
        full_idx = patch_indices_keep

    return gather_tokens_pallas(x, full_idx), patch_indices_keep


def _reference(x, patch_indices_keep):
    cls_tokens = x[:, :1]
    patches = x[:, 1:]
    gathered = jnp.take_along_axis(patches, patch_indices_keep[:, :, None], axis=1)
    return jnp.concatenate([cls_tokens, gathered], axis=1)


if __name__ == "__main__":
    key = jax.random.PRNGKey(0)
    kx, kdrop = jax.random.split(key)

    B, N, D = 4, 17, 128          # 1 cls token + 16 patches, lane-dense hidden
    x32 = jax.random.normal(kx, (B, N, D), dtype=jnp.float32)
    x16 = x32.astype(jnp.bfloat16)

    # 1) High keep fraction -> dense one-hot MXU path, bf16 (bit-exact).
    out, idx = patch_dropout(x16, kdrop, prob=0.25, exclude_first_token=True)
    out = jax.block_until_ready(out)
    K = idx.shape[1]
    assert out.shape == (B, 1 + K, D), out.shape
    assert jnp.array_equal(out, _reference(x16, idx)), "bf16 dense gather mismatch"

    # 2) Low keep fraction -> sparse row-DMA path, f32 (bit-exact copies).
    out_s, idx_s = patch_dropout(x32, kdrop, prob=0.75, exclude_first_token=True)
    out_s = jax.block_until_ready(out_s)
    assert out_s.shape == (B, 1 + idx_s.shape[1], D), out_s.shape
    assert jnp.array_equal(out_s, _reference(x32, idx_s)), "f32 DMA gather mismatch"

    # 3) exclude_first_token=False: gather over the full sequence, no cls concat.
    out2, idx2 = patch_dropout(x16, kdrop, prob=0.5, exclude_first_token=False)
    out2 = jax.block_until_ready(out2)
    ref2 = jnp.take_along_axis(x16, idx2[:, :, None], axis=1)
    assert out2.shape == (B, idx2.shape[1], D), out2.shape
    assert jnp.array_equal(out2, ref2), "exclude_first_token=False mismatch"

    # 4) Dense path forced on f32: precision=HIGHEST keeps the gathered values
    #    exact (row selection + values), unlike default bf16 MXU rounding.
    full_idx = jnp.concatenate([jnp.zeros((B, 1), jnp.int32), idx_s + 1], axis=1)
    g_dense = jax.block_until_ready(gather_tokens_pallas(x32, full_idx, path="dense"))
    g_ref = jnp.take_along_axis(x32, full_idx[:, :, None], axis=1)
    assert jnp.allclose(g_dense, g_ref, rtol=1e-6, atol=1e-6), \
        "forced-dense f32 gather mismatch"

    print("KERNEL_OK")
</pallas_src>

<mosaic_0001>
module attributes {stable_mosaic.version = 11 : i64} {
  func.func @_dense_gather_kernel(%arg0: i32, %arg1: memref<1x1x13xi32, #tpu.memory_space<vmem>>, %arg2: memref<1x17x128xbf16, #tpu.memory_space<vmem>>, %arg3: memref<1x13x128xbf16, #tpu.memory_space<vmem>>) attributes {dimension_semantics = [#tpu.dimension_semantics<parallel>], iteration_bounds = array<i64: 4>, scalar_prefetch = 0 : i64, scratch_operands = 0 : i64, tpu.core_type = #tpu.core_type<tc>, window_params = [{transform_indices = @transform_0, window_bounds = array<i64: 1, 1, 13>}, {transform_indices = @transform_1, window_bounds = array<i64: 1, 17, 128>}, {transform_indices = @transform_2, window_bounds = array<i64: 1, 13, 128>}]} {
    %0 = tpu.iota {dimensions = array<i32: 0>} : vector<17x13xi32>
    %c0_i32 = arith.constant 0 : i32
    %1 = arith.index_cast %c0_i32 : i32 to index
    %c0 = arith.constant 0 : index
    %c0_0 = arith.constant 0 : index
    %2 = vector.load %arg1[%1, %c0, %c0_0] : memref<1x1x13xi32, #tpu.memory_space<vmem>>, vector<1x1x13xi32>
    %3 = vector.shape_cast %2 : vector<1x1x13xi32> to vector<1x13xi32>
    %4 = vector.broadcast %3 : vector<1x13xi32> to vector<17x13xi32>
    %5 = arith.cmpi eq, %0, %4 : vector<17x13xi32>
    %6 = arith.extui %5 : vector<17x13xi1> to vector<17x13xi32>
    %7 = arith.sitofp %6 : vector<17x13xi32> to vector<17x13xf32>
    %8 = arith.truncf %7 : vector<17x13xf32> to vector<17x13xbf16>
    %9 = arith.index_cast %c0_i32 : i32 to index
    %c0_1 = arith.constant 0 : index
    %c0_2 = arith.constant 0 : index
    %10 = vector.load %arg2[%9, %c0_1, %c0_2] : memref<1x17x128xbf16, #tpu.memory_space<vmem>>, vector<1x17x128xbf16>
    %11 = vector.shape_cast %10 : vector<1x17x128xbf16> to vector<17x128xbf16>
    %cst = arith.constant dense<0.000000e+00> : vector<13x128xf32>
    %12 = tpu.matmul %8, %11, %cst {dimension_numbers = #tpu.dot_dimension_numbers<[0], [0], [1], [1], [0, 1, 1, 1], [], []>} : vector<17x13xbf16>, vector<17x128xbf16>, vector<13x128xf32> -> vector<13x128xf32>
    %13 = arith.truncf %12 : vector<13x128xf32> to vector<13x128xbf16>
    %14 = arith.index_cast %c0_i32 : i32 to index
    %c0_3 = arith.constant 0 : index
    %c0_4 = arith.constant 0 : index
    %15 = vector.load %arg3[%14, %c0_3, %c0_4] : memref<1x13x128xbf16, #tpu.memory_space<vmem>>, vector<1x13x128xbf16>
    %16 = vector.shape_cast %15 : vector<1x13x128xbf16> to vector<13x128xbf16>
    %17 = vector.shape_cast %13 : vector<13x128xbf16> to vector<1x13x128xbf16>
    tpu.vector_store %arg3[%14, %c0_3, %c0_4], %17 {strides = array<i32>} : memref<1x13x128xbf16, #tpu.memory_space<vmem>>, vector<1x13x128xbf16>,
    %c1_i32 = arith.constant 1 : i32
    return
  }
  func.func @transform_0(%arg0: i32) -> (i32, i32, i32) {
    %c0_i32 = arith.constant 0 : i32
    %c0_i32_0 = arith.constant 0 : i32
    %c0_i32_1 = arith.constant 0 : i32
    return %arg0, %c0_i32, %c0_i32_0 : i32, i32, i32
  }
  func.func @transform_1(%arg0: i32) -> (i32, i32, i32) {
    %c0_i32 = arith.constant 0 : i32
    %c0_i32_0 = arith.constant 0 : i32
    %c0_i32_1 = arith.constant 0 : i32
    return %arg0, %c0_i32, %c0_i32_0 : i32, i32, i32
  }
  func.func @transform_2(%arg0: i32) -> (i32, i32, i32) {
    %c0_i32 = arith.constant 0 : i32
    %c0_i32_0 = arith.constant 0 : i32
    %c0_i32_1 = arith.constant 0 : i32
    return %arg0, %c0_i32, %c0_i32_0 : i32, i32, i32
  }
}

</mosaic_0001>

<llo_original>
// kernel: tpu_custom_call.1
$region0: #{tpu_custom_call.1}
  #allocation0 [shape = 'u32[]', space=smem, size = 0x4, offset = 0x4, fixed_abs, tag = 'smem constant byte address 0x4 - core index']
  #allocation1 [shape = 'u32[144,128]{1,0:T(1,128)}', space=vmem, size = 0x12000, scoped, tag = 'internal scratch']
  %s0 = inlined_call_operand.vmem [shape: s32[4,1,13], index: 0, kind: input, shape index: {}]
  %s1 = inlined_call_operand.vmem [shape: bf16[4,17,128], index: 1, kind: input, shape index: {}]
  %s2 = inlined_call_operand.vmem [shape: bf16[4,13,128], index: 2, kind: output, shape index: {}]
  %s3 = sld [smem:[#allocation0]]
  $region41: #{tpu_custom_call.1} parent=0
    _
  %s5 = ssub.s32 1, %s3
  %s6 = scalar_select 0, %s5, %s3
  loop: start=0, step=1, limit=6
  $region2: #{tpu_custom_call.1} parent=0 // loop_pre_header
    _
  $region3: #{tpu_custom_call.1} parent=0 // loop_header
    %s8 = sphi 0, %s12
    %p9 = scmp.ge.s32.totalorder %s8, 6
    %s18 = sphi 0, %s20
    %s21 = sphi 0, %s18
    %s22 = sphi 0, %s21
    %s38 = sphi 0, %s22
    %s44 = sphi 0, %s46
    %s47 = sphi 0, %s44
    %s48 = sphi 0, %s47
    %s64 = sphi 0, %s48
    %s70 = sphi 0, %s72
    %s73 = sphi 0, %s70
    %s74 = sphi 0, %s73
    %s90 = sphi 0, %s74
  $region4: #{tpu_custom_call.1} parent=0 // loop_header_branch
    %11 = sbr.rel (%p9) target = $region8
  $region5: #{tpu_custom_call.1} parent=0 // loop_body
    %s13 = ssub.s32 %s8, 1
    %s14 = ssub.s32 %s8, 2
    %s15 = sadd.s32 %s8, 1
    %s16 = ssub.s32 %s8, %s15
    %p17 = scmp.eq.s32.totalorder %s16, 0
    %s19 = sadd.s32 %s18, 1
    %s20 = scalar_select %p17, %s18, %s19
    %p23 = pneg %p17
    %p24 = scmp.eq.s32.totalorder %s8, 3
    %p25 = por %p23, %p24
    %p26 = scmp.ne.s32.totalorder %s18, %s21
    %p27 = scmp.eq.s32.totalorder %s8, 0
    %p28 = por %p26, %p27
    %p29 = scmp.ne.s32.totalorder %s18, %s21
    %p30 = scmp.eq.s32.totalorder %s13, 3
    %p31 = por %p29, %p30
    %p32 = scmp.ne.s32.totalorder %s21, %s22
    %p33 = scmp.eq.s32.totalorder %s13, 0
    %p34 = por %p32, %p33
    %p35 = scmp.ne.s32.totalorder %s21, %s22
    %p36 = scmp.eq.s32.totalorder %s14, 3
    %p37 = por %p35, %p36
    %p39 = scmp.ne.s32.totalorder %s22, %s38
    %p40 = scmp.eq.s32.totalorder %s14, 0
    %p41 = por %p39, %p40
    %s42 = ssub.s32 %s8, %s15
    %p43 = scmp.eq.s32.totalorder %s42, 0
    %s45 = sadd.s32 %s44, 1
    %s46 = scalar_select %p43, %s44, %s45
    %p49 = pneg %p43
    %p50 = scmp.eq.s32.totalorder %s8, 3
    %p51 = por %p49, %p50
    %p52 = scmp.ne.s32.totalorder %s44, %s47
    %p53 = scmp.eq.s32.totalorder %s8, 0
    %p54 = por %p52, %p53
    %p55 = scmp.ne.s32.totalorder %s44, %s47
    %p56 = scmp.eq.s32.totalorder %s13, 3
    %p57 = por %p55, %p56
    %p58 = scmp.ne.s32.totalorder %s47, %s48
    %p59 = scmp.eq.s32.totalorder %s13, 0
    %p60 = por %p58, %p59
    %p61 = scmp.ne.s32.totalorder %s47, %s48
    %p62 = scmp.eq.s32.totalorder %s14, 3
    %p63 = por %p61, %p62
    %p65 = scmp.ne.s32.totalorder %s48, %s64
    %p66 = scmp.eq.s32.totalorder %s14, 0
    %p67 = por %p65, %p66
    %s68 = ssub.s32 %s8, %s15
    %p69 = scmp.eq.s32.totalorder %s68, 0
    %s71 = sadd.s32 %s70, 1
    %s72 = scalar_select %p69, %s70, %s71
    %p75 = pneg %p69
    %p76 = scmp.eq.s32.totalorder %s8, 3
    %p77 = por %p75, %p76
    %p78 = scmp.ne.s32.totalorder %s70, %s73
    %p79 = scmp.eq.s32.totalorder %s8, 0
    %p80 = por %p78, %p79
    %p81 = scmp.ne.s32.totalorder %s70, %s73
    %p82 = scmp.eq.s32.totalorder %s13, 3
    %p83 = por %p81, %p82
    %p84 = scmp.ne.s32.totalorder %s73, %s74
    %p85 = scmp.eq.s32.totalorder %s13, 0
    %p86 = por %p84, %p85
    %p87 = scmp.ne.s32.totalorder %s73, %s74
    %p88 = scmp.eq.s32.totalorder %s14, 3
    %p89 = por %p87, %p88
    %p91 = scmp.ne.s32.totalorder %s74, %s90
    %p92 = scmp.eq.s32.totalorder %s14, 0
    %p93 = por %p91, %p92
    %p94 = scmp.le.s32.totalorder 1, %s8
    %p95 = scmp.lt.s32.totalorder %s8, 5
    %p96 = pnand %p94, %p95
    %p97 = pneg %p96
    // Predicated region
    $region9: #{tpu_custom_call.1} parent=5 // pred_check
      _
    $region10: #{tpu_custom_call.1} parent=5 // pred_check_branch
      %99 = sbr.rel (%p96) target = $region12
    $region11: #{tpu_custom_call.1} parent=5 // pred_region
      %s100 = ssub.s32 %s8, 1
    $region12: #{tpu_custom_call.1} parent=5 // pred_fallthru
      _
    %p101 = scmp.lt.s32.totalorder %s8, 4
    // Predicated region
    $region13: #{tpu_custom_call.1} parent=5 // pred_check
      %p102 = pneg %p101
    $region14: #{tpu_custom_call.1} parent=5 // pred_check_branch
      %104 = sbr.rel (%p102) target = $region16
    $region15: #{tpu_custom_call.1} parent=5 // pred_region
      // Predicated region
      $region17: #{tpu_custom_call.1} parent=15 // pred_check
        %p105 = pneg %p28
      $region18: #{tpu_custom_call.1} parent=15 // pred_check_branch
        %107 = sbr.rel (%p105) target = $region20
      $region19: #{tpu_custom_call.1} parent=15 // pred_region
        %p108 = scmp.lt.s32.totalorder %s8, 3
        %s109 = scalar_select %p108, %s8, 3
        %s110 = scalar_lea.vmem %s0, %s109
      $region20: #{tpu_custom_call.1} parent=15 // pred_fallthru
        _
      // Predicated region
      $region21: #{tpu_custom_call.1} parent=15 // pred_check
        %p111 = pneg %p54
      $region22: #{tpu_custom_call.1} parent=15 // pred_check_branch
        %113 = sbr.rel (%p111) target = $region24
      $region23: #{tpu_custom_call.1} parent=15 // pred_region
        %p114 = scmp.lt.s32.totalorder %s8, 3
        %s115 = scalar_select %p114, %s8, 3
        %s116 = smul.addr %s115, 3
        %s117 = smul.addr %s116, 4
        %s118 = scalar_lea.vmem %s1, %s117
      $region24: #{tpu_custom_call.1} parent=15 // pred_fallthru
        _
    $region16: #{tpu_custom_call.1} parent=5 // pred_fallthru
      _
    %p119 = scmp.le.s32.totalorder 1, %s8
    %p120 = scmp.lt.s32.totalorder %s8, 5
    %p121 = pnand %p119, %p120
    %p122 = pneg %p121
    // Predicated region
    $region25: #{tpu_custom_call.1} parent=5 // pred_check
      _
    $region26: #{tpu_custom_call.1} parent=5 // pred_check_branch
      %124 = sbr.rel (%p121) target = $region28
    $region27: #{tpu_custom_call.1} parent=5 // pred_region
      %s125 = ssub.s32 %s8, 1
      %p126 = scmp.lt.s32.totalorder %s13, 3
      %s127 = scalar_select %p126, %s13, 3
      %s128 = scalar_lea.vmem %s0, %s127
      %p129 = pneg %p34
      %p130 = pneg %p31
      %p131 = scmp.lt.s32.totalorder %s13, 3
      %s132 = scalar_select %p131, %s13, 3
      %s133 = smul.addr %s132, 3
      %s134 = smul.addr %s133, 4
      %s135 = scalar_lea.vmem %s1, %s134
      %p136 = pneg %p60
      %p137 = pneg %p57
      %p138 = pneg %p86
      %p139 = pneg %p83
      %p140 = scmp.lt.s32.totalorder %s13, 3
      %s141 = scalar_select %p140, %s13, 3
      %s142 = smul.addr %s141, 2
      %s143 = smul.addr %s142, 4
      %s144 = scalar_lea.vmem %s2, %s143
      %p145 = scmp.lt.s32.totalorder %s13, 3
      %s146 = scalar_select %p145, %s13, 3
      %s147 = scalar_lea.vmem %s0, %s146
      %p148 = scmp.lt.s32.totalorder %s13, 3
      %s149 = scalar_select %p148, %s13, 3
      %s150 = smul.addr %s149, 3
      %s151 = smul.addr %s150, 4
      %s152 = scalar_lea.vmem %s1, %s151
      %p153 = scmp.lt.s32.totalorder %s13, 3
      %s154 = scalar_select %p153, %s13, 3
      %s155 = smul.addr %s154, 2
      %s156 = smul.addr %s155, 4
      %s157 = scalar_lea.vmem %s2, %s156
      %v159 = vlaneseq
      %v160 = vshrl.u32 %v159, 7
      %v161 = vadd.s32 %v160, 8
      %v162 = vadd.s32 %v160, 16
      %v163 = vld [vmem:[%s147] sm:$0x1]
      %v164 = vlaneseq
      %v165 = vshrl.u32 %v164, 7
      %v166 = vsub.s32 0, %v165
      %v167 = vrot.slane %v163, %v166
      %vm168 = vcmp.eq.s32.totalorder %v160, %v167
      %vm169 = vcmp.eq.s32.totalorder %v161, %v167
      %vm170 = vcmp.eq.s32.totalorder %v162, %v167
      %v171 = vsel %vm168, 1, 0
      %v172 = vsel %vm169, 1, 0
      %v173 = vsel %vm170, 1, 0
      %v174 = vcvt.s32.f32 %v171
      %v175 = vcvt.s32.f32 %v172
      %v176 = vcvt.s32.f32 %v173
      %v177 = vpack.c.bf16 %v175, %v174
      %v178 = vpack.c.bf16 %v176, %v176
      %v179 = vld [vmem:[%s152] sm:$0xf]
      %v180 = vld [vmem:[%s152 + $0x4] sm:$0xf]
      %v181 = vld [vmem:[%s152 + $0x8] sm:$0x1]
      %182 = vxpose.xlu0.c.b16.start [1/8] %v177, 128
      %183 = vxpose.xlu0.c.b16.cont [2/8] %v178, 128
      %184 = vxpose.xlu0.c.b16.cont [3/8] 0, 128
      %185 = vxpose.xlu0.c.b16.cont [4/8] 0, 128
      %186 = vxpose.xlu0.c.b16.cont [5/8] 0, 128
      %187 = vxpose.xlu0.c.b16.cont [6/8] 0, 128
      %188 = vxpose.xlu0.c.b16.cont [7/8] 0, 128
      %189 = vxpose.xlu0.c.b16.end [8/8] 0, 128
      %v190 = vpop.trf.xlu0
      %v191 = vpop.trf.xlu0
      %v192 = vpop.trf.xlu0
      %v193 = vpop.trf.xlu0
      %v194 = vpop.trf.xlu0
      %v195 = vpop.trf.xlu0
      %v196 = vpop.trf.xlu0
      %v197 = vpop.trf.xlu0
      %v201 = vunpack.c.l.b16 %v179
      %v202 = vunpack.c.l.b16 %v180
      %v203 = vunpack.c.l.b16 %v181
      %v204 = vpack.c.b16 %v202, %v201
      %v205 = vpack.c.b16 %v203, %v203
      %vm207 = vcmask 138240
      %v209 = vsel %vm207, %v190, 0
      %vm211 = vcmask 1040384
      %v212 = vsel 0, 4294967295, 65535
      %v213 = vsel %vm211, %v212, 0
      %v215 = vand.u32 %v205, %v213
      %217 = vmatprep.subr.bf16.mxu0 0
      %218 = vmatpush1.bf16.msra.mxu0 0
      %219 = vmatprep.subr.bf16.mxu0 0
      %220 = vmatpush1.bf16.msra.mxu0 0
      %221 = vmatprep.subr.bf16.mxu0 0
      %222 = vmatpush1.bf16.msra.mxu0 0
      %223 = vmatprep.subr.bf16.mxu0 0
      %224 = vmatpush1.bf16.msra.mxu0 0
      %225 = vmatprep.subr.bf16.mxu0 0
      %226 = vmatpush1.bf16.msra.mxu0 0
      %227 = vmatprep.subr.bf16.mxu0 0
      %228 = vmatpush1.bf16.msra.mxu0 0
      %229 = vmatprep.subr.bf16.mxu0 0
      %230 = vmatpush1.bf16.msra.mxu0 %v215
      %231 = vmatprep.subr.bf16.mxu0 0
      %232 = vmatpush1.bf16.msra.mxu0 %v204
      %233 = vmatprep.subr.bf16.mxu0 0
      %234 = vmatpush2.bf16.msra.mxu0 0
      %235 = vmatprep.subr.bf16.mxu0 0
      %236 = vmatpush2.bf16.msra.mxu0 0
      %237 = vmatprep.subr.bf16.mxu0 0
      %238 = vmatpush2.bf16.msra.mxu0 0
      %239 = vmatprep.subr.bf16.mxu0 0
      %240 = vmatpush2.bf16.msra.mxu0 0
      %241 = vmatprep.subr.bf16.mxu0 0
      %242 = vmatpush2.bf16.msra.mxu0 0
      %243 = vmatprep.subr.bf16.mxu0 0
      %244 = vmatpush2.bf16.msra.mxu0 0
      %245 = vmatprep.subr.bf16.mxu0 0
      %246 = vmatpush2.bf16.msra.mxu0 0
      %247 = vmatprep.subr.bf16.mxu0 0
      %248 = vmatpush2.bf16.msra.mxu0 0
      %249 = vmatprep.mubr.bf16.mxu0 0
      %250 = vmatmul.mubr.bf16.gmra.mxu0 %v209
      %v251 = vpop.f32.mrf.mxu0
      %v252 = vadd.f32 0.0, %v251
      %v253 = vpop.f32.mrf.mxu0
      %v254 = vpop.f32.mrf.mxu0
      %v255 = vadd.f32 0.0, %v254
      %v256 = vpop.f32.mrf.mxu0
      %257 = vdwg.mxu0
      %v258 = vpack.c.bf16 %v255, %v252
      %v260 = vunpack.c.l.b16 %v258
      %v261 = vunpack.c.h.b16 %v258
      %v262 = vpack.c.b16 %v260, %v260
      %v263 = vpack.c.b16 %v261, %v261
      %266 = vst [vmem:[%s157] sm:$0xf] %v262
      %vm267 = vcmask 1042432
      %vm268 = vsmask.f32 2304
      %vm269 = vmand %vm267, %vm268
      %v270 = vld [vmem:[%s157 + $0x4] sm:$0x7]
      %v271 = vsel %vm269, %v263, %v270
      %272 = vst [vmem:[%s157 + $0x4] sm:$0x7] %v271
      %p273 = scmp.lt.s32.totalorder %s13, 3
      %s274 = scalar_select %p273, %s13, 3
      %s275 = smul.addr %s274, 2
      %s276 = smul.addr %s275, 4
      %s277 = scalar_lea.vmem %s2, %s276
      // Predicated region
      $region29: #{tpu_custom_call.1} parent=27 // pred_check
        %p278 = pneg %p83
      $region30: #{tpu_custom_call.1} parent=27 // pred_check_branch
        %280 = sbr.rel (%p278) target = $region32
      $region31: #{tpu_custom_call.1} parent=27 // pred_region
        _
      $region32: #{tpu_custom_call.1} parent=27 // pred_fallthru
        _
    $region28: #{tpu_custom_call.1} parent=5 // pred_fallthru
      _
    %p281 = scmp.le.s32.totalorder 2, %s8
    // Predicated region
    $region33: #{tpu_custom_call.1} parent=5 // pred_check
      %p282 = pneg %p281
    $region34: #{tpu_custom_call.1} parent=5 // pred_check_branch
      %284 = sbr.rel (%p282) target = $region36
    $region35: #{tpu_custom_call.1} parent=5 // pred_region
      %s285 = ssub.s32 %s8, 2
      // Predicated region
      $region37: #{tpu_custom_call.1} parent=35 // pred_check
        %p286 = pneg %p89
      $region38: #{tpu_custom_call.1} parent=35 // pred_check_branch
        %288 = sbr.rel (%p286) target = $region40
      $region39: #{tpu_custom_call.1} parent=35 // pred_region
        %p289 = scmp.lt.s32.totalorder %s14, 3
        %s290 = scalar_select %p289, %s14, 3
        %s291 = smul.addr %s290, 2
        %s292 = smul.addr %s291, 4
        %s293 = scalar_lea.vmem %s2, %s292
      $region40: #{tpu_custom_call.1} parent=35 // pred_fallthru
        _
    $region36: #{tpu_custom_call.1} parent=5 // pred_fallthru
      _
  $region6: #{tpu_custom_call.1} parent=0 // loop_footer
    %s12 = sadd.s32 1, %s8
  $region7: #{tpu_custom_call.1} parent=0 // loop_footer_branch
    %7 = sbr.rel target = $region3
  $region8: #{tpu_custom_call.1} parent=0 // loop_exit
    _

</llo_original>
